<compile_context>
chip_gen: v5e
topology: v5e:2x2
jax: 0.10.0
libtpu: 0.0.40
codegen_flags: <defaults>
</compile_context>

<pallas_src>
import jax
import jax.numpy as jnp
from jax.experimental import pallas as pl
from jax.experimental.pallas import tpu as pltpu


def _round_up(x, m):
    return ((x + m - 1) // m) * m


def _linear_block_kernel(x_ref, w_ref, b_ref, o_ref):
    # x_ref: (TILE_B, Din) bf16 | w_ref: (Din, Dout) bf16 | b_ref: (1, Dout) f32
    # MXU matmul with f32 accumulation; bias + ReLU on the VPU in f32.
    h = jnp.dot(x_ref[...], w_ref[...], preferred_element_type=jnp.float32)
    h = h + b_ref[...]
    # dropout(p=0.0) / eval-mode dropout == identity
    o_ref[...] = jnp.maximum(h, 0.0).astype(o_ref.dtype)


def _build_linear_block_call(B_pad, Din, Dout, tile_b, single_buffer_weights):
    # W and b have constant index_map across the grid (resident in VMEM);
    # single-buffer them to avoid allocating 2x copies.
    resident = dict(pipeline_mode=pl.Buffered(1)) if single_buffer_weights else {}
    return pl.pallas_call(
        _linear_block_kernel,
        out_shape=jax.ShapeDtypeStruct((B_pad, Dout), jnp.float32),
        grid_spec=pltpu.PrefetchScalarGridSpec(
            num_scalar_prefetch=0,
            grid=(B_pad // tile_b,),
            in_specs=[
                pl.BlockSpec((tile_b, Din), lambda i: (i, 0)),           # x tile
                pl.BlockSpec((Din, Dout), lambda i: (0, 0), **resident),  # W
                pl.BlockSpec((1, Dout), lambda i: (0, 0), **resident),    # b
            ],
            out_specs=pl.BlockSpec((tile_b, Dout), lambda i: (i, 0)),
        ),
        compiler_params=pltpu.CompilerParams(
            dimension_semantics=("parallel",)),
    )


def linear_block(x, weight, bias, *, max_tile_b=256):
    """Fused LinearBlock forward: relu(x @ weight.T + bias).

    x:      [B, in_features]               float32 (or bf16)
    weight: [out_features, in_features]    (PyTorch nn.Linear layout)
    bias:   [out_features]
    returns [B, out_features] float32
    """
    B, Din = x.shape
    Dout = weight.shape[0]

    # bf16 operands on the MXU, f32 accumulation inside the kernel.
    x_bf = x.astype(jnp.bfloat16)
    w_bf = weight.T.astype(jnp.bfloat16)              # [Din, Dout]
    b_f32 = bias.astype(jnp.float32).reshape(1, Dout)

    # Batch tiling: biggest sublane-aligned tile up to max_tile_b; pad ragged
    # batches with zeros instead of asserting divisibility (padded rows compute
    # relu(b) and are sliced off).
    tile_b = min(_round_up(B, 8), max_tile_b)
    B_pad = _round_up(B, tile_b)
    if B_pad != B:
        x_bf = jnp.pad(x_bf, ((0, B_pad - B), (0, 0)))

    try:
        out = _build_linear_block_call(B_pad, Din, Dout, tile_b, True)(
            x_bf, w_bf, b_f32)
    except Exception:
        # Fallback: same kernel without pl.Buffered(1) on the resident operands,
        # in case this jax build rejects single-buffered pipeline_mode.
        out = _build_linear_block_call(B_pad, Din, Dout, tile_b, False)(
            x_bf, w_bf, b_f32)
    return out[:B]


if __name__ == "__main__":
    key = jax.random.PRNGKey(0)
    k_x, k_w, k_b, k_x2 = jax.random.split(key, 4)

    # Small shapes consistent with LinearBlock(in_features=256, out_features=128).
    B, Din, Dout = 10, 256, 128          # ragged batch exercises padding path
    x = jax.random.normal(k_x, (B, Din), dtype=jnp.float32)
    weight = jax.random.normal(k_w, (Dout, Din), dtype=jnp.float32) * 0.02
    bias = jax.random.normal(k_b, (Dout,), dtype=jnp.float32) * 0.02

    out = jax.block_until_ready(linear_block(x, weight, bias))
    assert out.shape == (B, Dout), out.shape

    # Reference modelling the kernel numerics (bf16 operands, f32 accumulation).
    def ref_fn(x_, w_, b_):
        xw = (x_.astype(jnp.bfloat16).astype(jnp.float32)
              @ w_.T.astype(jnp.bfloat16).astype(jnp.float32))
        return jnp.maximum(xw + b_[None, :], 0.0)

    ref = ref_fn(x, weight, bias)
    assert jnp.allclose(out, ref, atol=2e-3, rtol=2e-3), \
        float(jnp.max(jnp.abs(out - ref)))

    # Pure-f32 module reference (only the deliberate bf16 cast differs).
    ref_f32 = jnp.maximum(x @ weight.T + bias[None, :], 0.0)
    assert jnp.allclose(out, ref_f32, atol=2e-2, rtol=2e-2)

    # Larger batch: multi-step grid (2 x 256-row tiles) + padding of 212 rows.
    B2 = 300
    x2 = jax.random.normal(k_x2, (B2, Din), dtype=jnp.float32)
    out2 = jax.block_until_ready(linear_block(x2, weight, bias))
    assert out2.shape == (B2, Dout), out2.shape
    ref2 = ref_fn(x2, weight, bias)
    assert jnp.allclose(out2, ref2, atol=2e-3, rtol=2e-3)

    print("KERNEL_OK")
</pallas_src>

<mosaic_0001>
module attributes {stable_mosaic.version = 11 : i64} {
  func.func @_linear_block_kernel(%arg0: i32, %arg1: memref<16x256xbf16, #tpu.memory_space<vmem>>, %arg2: memref<256x128xbf16, #tpu.memory_space<vmem>>, %arg3: memref<1x128xf32, #tpu.memory_space<vmem>>, %arg4: memref<16x128xf32, #tpu.memory_space<vmem>>) attributes {dimension_semantics = [#tpu.dimension_semantics<parallel>], iteration_bounds = array<i64: 1>, scalar_prefetch = 0 : i64, scratch_operands = 0 : i64, tpu.core_type = #tpu.core_type<tc>, window_params = [{transform_indices = @transform_0, window_bounds = array<i64: 16, 256>}, {pipeline_mode = #tpu.pipeline_mode<synchronous>, transform_indices = @transform_1, window_bounds = array<i64: 256, 128>}, {pipeline_mode = #tpu.pipeline_mode<synchronous>, transform_indices = @transform_2, window_bounds = array<i64: 1, 128>}, {transform_indices = @transform_3, window_bounds = array<i64: 16, 128>}]} {
    %c0 = arith.constant 0 : index
    %c0_0 = arith.constant 0 : index
    %0 = vector.load %arg1[%c0, %c0_0] : memref<16x256xbf16, #tpu.memory_space<vmem>>, vector<16x256xbf16>
    %c0_1 = arith.constant 0 : index
    %c0_2 = arith.constant 0 : index
    %1 = vector.load %arg2[%c0_1, %c0_2] : memref<256x128xbf16, #tpu.memory_space<vmem>>, vector<256x128xbf16>
    %cst = arith.constant dense<0.000000e+00> : vector<16x128xf32>
    %2 = tpu.matmul %0, %1, %cst {dimension_numbers = #tpu.dot_dimension_numbers<[1], [0], [0], [1], [0, 0, 1, 1], [], []>} : vector<16x256xbf16>, vector<256x128xbf16>, vector<16x128xf32> -> vector<16x128xf32>
    %c0_3 = arith.constant 0 : index
    %c0_4 = arith.constant 0 : index
    %3 = vector.load %arg3[%c0_3, %c0_4] : memref<1x128xf32, #tpu.memory_space<vmem>>, vector<1x128xf32>
    %4 = vector.broadcast %3 : vector<1x128xf32> to vector<16x128xf32>
    %5 = arith.addf %2, %4 : vector<16x128xf32>
    %cst_5 = arith.constant 0.000000e+00 : f32
    %6 = vector.broadcast %cst_5 : f32 to vector<16x128xf32>
    %7 = arith.maximumf %5, %6 : vector<16x128xf32>
    %c0_6 = arith.constant 0 : index
    %c0_7 = arith.constant 0 : index
    %8 = vector.load %arg4[%c0_6, %c0_7] : memref<16x128xf32, #tpu.memory_space<vmem>>, vector<16x128xf32>
    tpu.vector_store %arg4[%c0_6, %c0_7], %7 {strides = array<i32>} : memref<16x128xf32, #tpu.memory_space<vmem>>, vector<16x128xf32>,
    return
  }
  func.func @transform_0(%arg0: i32) -> (i32, i32) {
    %c0_i32 = arith.constant 0 : i32
    %c0_i32_0 = arith.constant 0 : i32
    return %arg0, %c0_i32 : i32, i32
  }
  func.func @transform_1(%arg0: i32) -> (i32, i32) {
    %c0_i32 = arith.constant 0 : i32
    %c0_i32_0 = arith.constant 0 : i32
    %c0_i32_1 = arith.constant 0 : i32
    return %c0_i32, %c0_i32_0 : i32, i32
  }
  func.func @transform_2(%arg0: i32) -> (i32, i32) {
    %c0_i32 = arith.constant 0 : i32
    %c0_i32_0 = arith.constant 0 : i32
    %c0_i32_1 = arith.constant 0 : i32
    return %c0_i32, %c0_i32_0 : i32, i32
  }
  func.func @transform_3(%arg0: i32) -> (i32, i32) {
    %c0_i32 = arith.constant 0 : i32
    %c0_i32_0 = arith.constant 0 : i32
    return %arg0, %c0_i32 : i32, i32
  }
}

module attributes {stable_mosaic.version = 11 : i64} {
  func.func @_linear_block_kernel(%arg0: i32, %arg1: memref<16x256xbf16, #tpu.memory_space<vmem>>, %arg2: memref<256x128xbf16, #tpu.memory_space<vmem>>, %arg3: memref<1x128xf32, #tpu.memory_space<vmem>>, %arg4: memref<16x128xf32, #tpu.memory_space<vmem>>) attributes {dimension_semantics = [#tpu.dimension_semantics<parallel>], iteration_bounds = array<i64: 1>, scalar_prefetch = 0 : i64, scratch_operands = 0 : i64, tpu.core_type = #tpu.core_type<tc>, window_params = [{transform_indices = @transform_0, window_bounds = array<i64: 16, 256>}, {pipeline_mode = #tpu.pipeline_mode<synchronous>, transform_indices = @transform_1, window_bounds = array<i64: 256, 128>}, {pipeline_mode = #tpu.pipeline_mode<synchronous>, transform_indices = @transform_2, window_bounds = array<i64: 1, 128>}, {transform_indices = @transform_3, window_bounds = array<i64: 16, 128>}]} {
    %c0 = arith.constant 0 : index
    %c0_0 = arith.constant 0 : index
    %0 = vector.load %arg1[%c0, %c0_0] : memref<16x256xbf16, #tpu.memory_space<vmem>>, vector<16x256xbf16>
    %c0_1 = arith.constant 0 : index
    %c0_2 = arith.constant 0 : index
    %1 = vector.load %arg2[%c0_1, %c0_2] : memref<256x128xbf16, #tpu.memory_space<vmem>>, vector<256x128xbf16>
    %cst = arith.constant dense<0.000000e+00> : vector<16x128xf32>
    %2 = tpu.matmul %0, %1, %cst {dimension_numbers = #tpu.dot_dimension_numbers<[1], [0], [0], [1], [0, 0, 1, 1], [], []>} : vector<16x256xbf16>, vector<256x128xbf16>, vector<16x128xf32> -> vector<16x128xf32>
    %c0_3 = arith.constant 0 : index
    %c0_4 = arith.constant 0 : index
    %3 = vector.load %arg3[%c0_3, %c0_4] : memref<1x128xf32, #tpu.memory_space<vmem>>, vector<1x128xf32>
    %4 = vector.broadcast %3 : vector<1x128xf32> to vector<16x128xf32>
    %5 = arith.addf %2, %4 : vector<16x128xf32>
    %cst_5 = arith.constant 0.000000e+00 : f32
    %6 = vector.broadcast %cst_5 : f32 to vector<16x128xf32>
    %7 = arith.maximumf %5, %6 : vector<16x128xf32>
    %c0_6 = arith.constant 0 : index
    %c0_7 = arith.constant 0 : index
    %8 = vector.load %arg4[%c0_6, %c0_7] : memref<16x128xf32, #tpu.memory_space<vmem>>, vector<16x128xf32>
    tpu.vector_store %arg4[%c0_6, %c0_7], %7 {strides = array<i32>} : memref<16x128xf32, #tpu.memory_space<vmem>>, vector<16x128xf32>,
    return
  }
  func.func @transform_0(%arg0: i32) -> (i32, i32) {
    %c0_i32 = arith.constant 0 : i32
    %c0_i32_0 = arith.constant 0 : i32
    return %arg0, %c0_i32 : i32, i32
  }
  func.func @transform_1(%arg0: i32) -> (i32, i32) {
    %c0_i32 = arith.constant 0 : i32
    %c0_i32_0 = arith.constant 0 : i32
    %c0_i32_1 = arith.constant 0 : i32
    return %c0_i32, %c0_i32_0 : i32, i32
  }
  func.func @transform_2(%arg0: i32) -> (i32, i32) {
    %c0_i32 = arith.constant 0 : i32
    %c0_i32_0 = arith.constant 0 : i32
    %c0_i32_1 = arith.constant 0 : i32
    return %c0_i32, %c0_i32_0 : i32, i32
  }
  func.func @transform_3(%arg0: i32) -> (i32, i32) {
    %c0_i32 = arith.constant 0 : i32
    %c0_i32_0 = arith.constant 0 : i32
    return %arg0, %c0_i32 : i32, i32
  }
}

</mosaic_0001>

<llo_original>
// kernel: tpu_custom_call.1
$region0: #{tpu_custom_call.1}
  #allocation0 [shape = 'u32[]', space=smem, size = 0x4, offset = 0x4, fixed_abs, tag = 'smem constant byte address 0x4 - core index']
  #allocation1 [shape = 'u32[72,128]{1,0:T(1,128)}', space=vmem, size = 0x9000, scoped, tag = 'internal scratch']
  %s0 = inlined_call_operand.hbm [shape: bf16[16,256], index: 0, kind: input, shape index: {}]
  %s1 = inlined_call_operand.hbm [shape: bf16[256,128], index: 1, kind: input, shape index: {}]
  %s2 = inlined_call_operand.vmem [shape: f32[1,128], index: 2, kind: input, shape index: {}]
  %s3 = inlined_call_operand.hbm [shape: f32[16,128], index: 3, kind: output, shape index: {}]
  %s4 = sld [smem:[#allocation0]]
  $region30: #{tpu_custom_call.1} parent=0
    _
  %s6 = ssub.s32 1, %s4
  %s7 = scalar_select 0, %s6, %s4
  $region1: #{tpu_custom_call.1} parent=0
    #allocation2 [shape = 'u8[8192]{0}', space=vmem, size = 0x2000, scoped, tag = 'input window, operand 0, single buffered']
    #allocation3 [shape = 's32[1]{0}', space=sflag, size = 0x4, scoped, tag = 'scoped memory for tpu_custom_call.1']
    #allocation4 [shape = 's32[1]{0}', space=sflag, size = 0x4, scoped, tag = 'scoped memory for tpu_custom_call.1']
    #allocation5 [shape = 'u8[65536]{0}', space=vmem, size = 0x10000, scoped, tag = 'input window, operand 1, single buffered']
    #allocation6 [shape = 's32[1]{0}', space=sflag, size = 0x4, scoped, tag = 'scoped memory for tpu_custom_call.1']
    #allocation7 [shape = 'u8[8192]{0}', space=vmem, size = 0x2000, scoped, tag = 'output window, operand 0, single buffered']
    %8 = vsyncpa [#allocation3], 0
    %9 = vsyncpa [#allocation6], 0
    %10 = vsyncpa [#allocation4], 0
    // Predicated region
    $region2: #{tpu_custom_call.1} parent=1 // pred_check
      _
    $region3: #{tpu_custom_call.1} parent=1 // pred_check_branch
      %12 = sbr.rel (0) target = $region5
    $region4: #{tpu_custom_call.1} parent=1 // pred_region
      %14 = vsyncadd [#allocation3], 0
      %s15 = sshll.u32 %s0, 4
      %s16 = int_to_ptr.hbm [resolvable:$true] %s15
      %s17 = sshll.u32 [#allocation2], 4
      %s18 = int_to_ptr.vmem [resolvable:$true] %s17
      %23 = dma.hbm_to_vmem [thread:$0]  %s16, 256, %s18, [#allocation3], 128, 128, 8
    $region5: #{tpu_custom_call.1} parent=1 // pred_fallthru
      _
    // Predicated region
    $region6: #{tpu_custom_call.1} parent=1 // pred_check
      _
    $region7: #{tpu_custom_call.1} parent=1 // pred_check_branch
      %25 = sbr.rel (0) target = $region9
    $region8: #{tpu_custom_call.1} parent=1 // pred_region
      %27 = vsyncadd [#allocation6], 0
      %s28 = sshll.u32 %s1, 4
      %s29 = int_to_ptr.hbm [resolvable:$true] %s28
      %s30 = sshll.u32 [#allocation5], 4
      %s31 = int_to_ptr.vmem [resolvable:$true] %s30
      %36 = dma.hbm_to_vmem [thread:$0]  %s29, 2048, %s31, [#allocation6], 64, 64, 4
    $region9: #{tpu_custom_call.1} parent=1 // pred_fallthru
      _
    // Predicated region
    $region10: #{tpu_custom_call.1} parent=1 // pred_check
      _
    $region11: #{tpu_custom_call.1} parent=1 // pred_check_branch
      %38 = sbr.rel (0) target = $region13
    $region12: #{tpu_custom_call.1} parent=1 // pred_region
      _
    $region13: #{tpu_custom_call.1} parent=1 // pred_fallthru
      _
    // Predicated region
    $region14: #{tpu_custom_call.1} parent=1 // pred_check
      _
    $region15: #{tpu_custom_call.1} parent=1 // pred_check_branch
      %40 = sbr.rel (0) target = $region17
    $region16: #{tpu_custom_call.1} parent=1 // pred_region
      %42 = dma.done [#allocation3], 256
    $region17: #{tpu_custom_call.1} parent=1 // pred_fallthru
      _
    // Predicated region
    $region18: #{tpu_custom_call.1} parent=1 // pred_check
      _
    $region19: #{tpu_custom_call.1} parent=1 // pred_check_branch
      %44 = sbr.rel (0) target = $region21
    $region20: #{tpu_custom_call.1} parent=1 // pred_region
      %46 = dma.done [#allocation6], 2048
    $region21: #{tpu_custom_call.1} parent=1 // pred_fallthru
      _
    %v47 = vld [vmem:[#allocation2] sm:$0xff]
    %v48 = vld [vmem:[#allocation2 + $0x8] sm:$0xff]
    %v49 = vld [vmem:[#allocation5] sm:$0xf]
    %v50 = vld [vmem:[#allocation5 + $0x4] sm:$0xf]
    %v51 = vld [vmem:[#allocation5 + $0x8] sm:$0xf]
    %v52 = vld [vmem:[#allocation5 + $0xc] sm:$0xf]
    %v53 = vld [vmem:[#allocation5 + $0x10] sm:$0xf]
    %v54 = vld [vmem:[#allocation5 + $0x14] sm:$0xf]
    %v55 = vld [vmem:[#allocation5 + $0x18] sm:$0xf]
    %v56 = vld [vmem:[#allocation5 + $0x1c] sm:$0xf]
    %v57 = vld [vmem:[#allocation5 + $0x20] sm:$0xf]
    %v58 = vld [vmem:[#allocation5 + $0x24] sm:$0xf]
    %v59 = vld [vmem:[#allocation5 + $0x28] sm:$0xf]
    %v60 = vld [vmem:[#allocation5 + $0x2c] sm:$0xf]
    %v61 = vld [vmem:[#allocation5 + $0x30] sm:$0xf]
    %v62 = vld [vmem:[#allocation5 + $0x34] sm:$0xf]
    %v63 = vld [vmem:[#allocation5 + $0x38] sm:$0xf]
    %v64 = vld [vmem:[#allocation5 + $0x3c] sm:$0xf]
    %v65 = vld [vmem:[#allocation5 + $0x40] sm:$0xf]
    %v66 = vld [vmem:[#allocation5 + $0x44] sm:$0xf]
    %v67 = vld [vmem:[#allocation5 + $0x48] sm:$0xf]
    %v68 = vld [vmem:[#allocation5 + $0x4c] sm:$0xf]
    %v69 = vld [vmem:[#allocation5 + $0x50] sm:$0xf]
    %v70 = vld [vmem:[#allocation5 + $0x54] sm:$0xf]
    %v71 = vld [vmem:[#allocation5 + $0x58] sm:$0xf]
    %v72 = vld [vmem:[#allocation5 + $0x5c] sm:$0xf]
    %v73 = vld [vmem:[#allocation5 + $0x60] sm:$0xf]
    %v74 = vld [vmem:[#allocation5 + $0x64] sm:$0xf]
    %v75 = vld [vmem:[#allocation5 + $0x68] sm:$0xf]
    %v76 = vld [vmem:[#allocation5 + $0x6c] sm:$0xf]
    %v77 = vld [vmem:[#allocation5 + $0x70] sm:$0xf]
    %v78 = vld [vmem:[#allocation5 + $0x74] sm:$0xf]
    %v79 = vld [vmem:[#allocation5 + $0x78] sm:$0xf]
    %v80 = vld [vmem:[#allocation5 + $0x7c] sm:$0xf]
    %v81 = vld [vmem:[%s2] sm:$0x1]
    %v83 = vperm.slane %v81, 0
    %v87 = vunpack.c.l.b16 %v47
    %v88 = vunpack.c.h.b16 %v47
    %v89 = vunpack.c.l.b16 %v48
    %v90 = vunpack.c.h.b16 %v48
    %v91 = vpack.c.b16 %v89, %v87
    %v92 = vpack.c.b16 %v90, %v88
    %v127 = vunpack.c.l.b16 %v49
    %v128 = vunpack.c.l.b16 %v50
    %v129 = vunpack.c.l.b16 %v51
    %v130 = vunpack.c.l.b16 %v52
    %v131 = vunpack.c.l.b16 %v53
    %v132 = vunpack.c.l.b16 %v54
    %v133 = vunpack.c.l.b16 %v55
    %v134 = vunpack.c.l.b16 %v56
    %v135 = vunpack.c.l.b16 %v57
    %v136 = vunpack.c.l.b16 %v58
    %v137 = vunpack.c.l.b16 %v59
    %v138 = vunpack.c.l.b16 %v60
    %v139 = vunpack.c.l.b16 %v61
    %v140 = vunpack.c.l.b16 %v62
    %v141 = vunpack.c.l.b16 %v63
    %v142 = vunpack.c.l.b16 %v64
    %v143 = vunpack.c.l.b16 %v65
    %v144 = vunpack.c.l.b16 %v66
    %v145 = vunpack.c.l.b16 %v67
    %v146 = vunpack.c.l.b16 %v68
    %v147 = vunpack.c.l.b16 %v69
    %v148 = vunpack.c.l.b16 %v70
    %v149 = vunpack.c.l.b16 %v71
    %v150 = vunpack.c.l.b16 %v72
    %v151 = vunpack.c.l.b16 %v73
    %v152 = vunpack.c.l.b16 %v74
    %v153 = vunpack.c.l.b16 %v75
    %v154 = vunpack.c.l.b16 %v76
    %v155 = vunpack.c.l.b16 %v77
    %v156 = vunpack.c.l.b16 %v78
    %v157 = vunpack.c.l.b16 %v79
    %v158 = vunpack.c.l.b16 %v80
    %v159 = vpack.c.b16 %v128, %v127
    %v160 = vpack.c.b16 %v130, %v129
    %v161 = vpack.c.b16 %v132, %v131
    %v162 = vpack.c.b16 %v134, %v133
    %v163 = vpack.c.b16 %v136, %v135
    %v164 = vpack.c.b16 %v138, %v137
    %v165 = vpack.c.b16 %v140, %v139
    %v166 = vpack.c.b16 %v142, %v141
    %v167 = vpack.c.b16 %v144, %v143
    %v168 = vpack.c.b16 %v146, %v145
    %v169 = vpack.c.b16 %v148, %v147
    %v170 = vpack.c.b16 %v150, %v149
    %v171 = vpack.c.b16 %v152, %v151
    %v172 = vpack.c.b16 %v154, %v153
    %v173 = vpack.c.b16 %v156, %v155
    %v174 = vpack.c.b16 %v158, %v157
    %191 = vmatpush.bf16.msra.mxu0 %v166
    %192 = vmatpush.bf16.msra.mxu0 %v165
    %193 = vmatpush.bf16.msra.mxu0 %v164
    %194 = vmatpush.bf16.msra.mxu0 %v163
    %195 = vmatpush.bf16.msra.mxu0 %v162
    %196 = vmatpush.bf16.msra.mxu0 %v161
    %197 = vmatpush.bf16.msra.mxu0 %v160
    %198 = vmatpush.bf16.msra.mxu0 %v159
    %199 = vmatmul.bf16.gmra.mxu0 %v91
    %v200 = vpop.f32.mrf.mxu0
    %v201 = vadd.f32 %v83, %v200
    %v202 = vpop.f32.mrf.mxu0
    %v203 = vadd.f32 %v83, %v202
    %204 = vdwg.mxu0
    %205 = vmatpush.bf16.msra.mxu0 %v174
    %206 = vmatpush.bf16.msra.mxu0 %v173
    %207 = vmatpush.bf16.msra.mxu0 %v172
    %208 = vmatpush.bf16.msra.mxu0 %v171
    %209 = vmatpush.bf16.msra.mxu0 %v170
    %210 = vmatpush.bf16.msra.mxu0 %v169
    %211 = vmatpush.bf16.msra.mxu0 %v168
    %212 = vmatpush.bf16.msra.mxu0 %v167
    %213 = vmatmul.bf16.gmra.mxu0 %v92
    %v214 = vpop.f32.mrf.mxu0
    %v215 = vadd.f32 %v201, %v214
    %v216 = vpop.f32.mrf.mxu0
    %v217 = vadd.f32 %v203, %v216
    %218 = vdwg.mxu0
    %v219 = vmax.f32 %v215, 0.0
    %v220 = vmax.f32 %v217, 0.0
    %221 = vst [vmem:[#allocation7] sm:$0xff] %v219
    %222 = vst [vmem:[#allocation7 + $0x8] sm:$0xff] %v220
    // Predicated region
    $region22: #{tpu_custom_call.1} parent=1 // pred_check
      _
    $region23: #{tpu_custom_call.1} parent=1 // pred_check_branch
      %224 = sbr.rel (0) target = $region25
    $region24: #{tpu_custom_call.1} parent=1 // pred_region
      %226 = vsyncadd [#allocation4], 0
      %s227 = sshll.u32 [#allocation7], 4
      %s228 = int_to_ptr.vmem [resolvable:$true] %s227
      %s229 = sshll.u32 %s3, 4
      %s230 = int_to_ptr.hbm [resolvable:$true] %s229
      %235 = dma.vmem_to_hbm [thread:$0]  %s228, 256, %s230, [#allocation4], 128, 128, 8
    $region25: #{tpu_custom_call.1} parent=1 // pred_fallthru
      _
    // Predicated region
    $region26: #{tpu_custom_call.1} parent=1 // pred_check
      _
    $region27: #{tpu_custom_call.1} parent=1 // pred_check_branch
      %237 = sbr.rel (0) target = $region29
    $region28: #{tpu_custom_call.1} parent=1 // pred_region
      %239 = dma.done [#allocation4], 256
    $region29: #{tpu_custom_call.1} parent=1 // pred_fallthru
      _
    %240 = vsyncpa [#allocation3], 1
    %241 = vsyncpa [#allocation6], 1
    %242 = vsyncpa [#allocation4], 1

// kernel: tpu_custom_call.1
$region0: #{tpu_custom_call.1}
  #allocation0 [shape = 'u32[]', space=smem, size = 0x4, offset = 0x4, fixed_abs, tag = 'smem constant byte address 0x4 - core index']
  #allocation1 [shape = 'u32[72,128]{1,0:T(1,128)}', space=vmem, size = 0x9000, scoped, tag = 'internal scratch']
  %s0 = inlined_call_operand.hbm [shape: bf16[16,256], index: 0, kind: input, shape index: {}]
  %s1 = inlined_call_operand.hbm [shape: bf16[256,128], index: 1, kind: input, shape index: {}]
  %s2 = inlined_call_operand.vmem [shape: f32[1,128], index: 2, kind: input, shape index: {}]
  %s3 = inlined_call_operand.hbm [shape: f32[16,128], index: 3, kind: output, shape index: {}]
  %s4 = sld [smem:[#allocation0]]
  $region30: #{tpu_custom_call.1} parent=0
    _
  %s6 = ssub.s32 1, %s4
  %s7 = scalar_select 0, %s6, %s4
  $region1: #{tpu_custom_call.1} parent=0
    #allocation2 [shape = 'u8[8192]{0}', space=vmem, size = 0x2000, scoped, tag = 'input window, operand 0, single buffered']
    #allocation3 [shape = 's32[1]{0}', space=sflag, size = 0x4, scoped, tag = 'scoped memory for tpu_custom_call.1']
    #allocation4 [shape = 's32[1]{0}', space=sflag, size = 0x4, scoped, tag = 'scoped memory for tpu_custom_call.1']
    #allocation5 [shape = 'u8[65536]{0}', space=vmem, size = 0x10000, scoped, tag = 'input window, operand 1, single buffered']
    #allocation6 [shape = 's32[1]{0}', space=sflag, size = 0x4, scoped, tag = 'scoped memory for tpu_custom_call.1']
    #allocation7 [shape = 'u8[8192]{0}', space=vmem, size = 0x2000, scoped, tag = 'output window, operand 0, single buffered']
    %8 = vsyncpa [#allocation3], 0
    %9 = vsyncpa [#allocation6], 0
    %10 = vsyncpa [#allocation4], 0
    // Predicated region
    $region2: #{tpu_custom_call.1} parent=1 // pred_check
      _
    $region3: #{tpu_custom_call.1} parent=1 // pred_check_branch
      %12 = sbr.rel (0) target = $region5
    $region4: #{tpu_custom_call.1} parent=1 // pred_region
      %14 = vsyncadd [#allocation3], 0
      %s15 = sshll.u32 %s0, 4
      %s16 = int_to_ptr.hbm [resolvable:$true] %s15
      %s17 = sshll.u32 [#allocation2], 4
      %s18 = int_to_ptr.vmem [resolvable:$true] %s17
      %23 = dma.hbm_to_vmem [thread:$0]  %s16, 256, %s18, [#allocation3], 128, 128, 8
    $region5: #{tpu_custom_call.1} parent=1 // pred_fallthru
      _
    // Predicated region
    $region6: #{tpu_custom_call.1} parent=1 // pred_check
      _
    $region7: #{tpu_custom_call.1} parent=1 // pred_check_branch
      %25 = sbr.rel (0) target = $region9
    $region8: #{tpu_custom_call.1} parent=1 // pred_region
      %27 = vsyncadd [#allocation6], 0
      %s28 = sshll.u32 %s1, 4
      %s29 = int_to_ptr.hbm [resolvable:$true] %s28
      %s30 = sshll.u32 [#allocation5], 4
      %s31 = int_to_ptr.vmem [resolvable:$true] %s30
      %36 = dma.hbm_to_vmem [thread:$0]  %s29, 2048, %s31, [#allocation6], 64, 64, 4
    $region9: #{tpu_custom_call.1} parent=1 // pred_fallthru
      _
    // Predicated region
    $region10: #{tpu_custom_call.1} parent=1 // pred_check
      _
    $region11: #{tpu_custom_call.1} parent=1 // pred_check_branch
      %38 = sbr.rel (0) target = $region13
    $region12: #{tpu_custom_call.1} parent=1 // pred_region
      _
    $region13: #{tpu_custom_call.1} parent=1 // pred_fallthru
      _
    // Predicated region
    $region14: #{tpu_custom_call.1} parent=1 // pred_check
      _
    $region15: #{tpu_custom_call.1} parent=1 // pred_check_branch
      %40 = sbr.rel (0) target = $region17
    $region16: #{tpu_custom_call.1} parent=1 // pred_region
      %42 = dma.done [#allocation3], 256
    $region17: #{tpu_custom_call.1} parent=1 // pred_fallthru
      _
    // Predicated region
    $region18: #{tpu_custom_call.1} parent=1 // pred_check
      _
    $region19: #{tpu_custom_call.1} parent=1 // pred_check_branch
      %44 = sbr.rel (0) target = $region21
    $region20: #{tpu_custom_call.1} parent=1 // pred_region
      %46 = dma.done [#allocation6], 2048
    $region21: #{tpu_custom_call.1} parent=1 // pred_fallthru
      _
    %v47 = vld [vmem:[#allocation2] sm:$0xff]
    %v48 = vld [vmem:[#allocation2 + $0x8] sm:$0xff]
    %v49 = vld [vmem:[#allocation5] sm:$0xf]
    %v50 = vld [vmem:[#allocation5 + $0x4] sm:$0xf]
    %v51 = vld [vmem:[#allocation5 + $0x8] sm:$0xf]
    %v52 = vld [vmem:[#allocation5 + $0xc] sm:$0xf]
    %v53 = vld [vmem:[#allocation5 + $0x10] sm:$0xf]
    %v54 = vld [vmem:[#allocation5 + $0x14] sm:$0xf]
    %v55 = vld [vmem:[#allocation5 + $0x18] sm:$0xf]
    %v56 = vld [vmem:[#allocation5 + $0x1c] sm:$0xf]
    %v57 = vld [vmem:[#allocation5 + $0x20] sm:$0xf]
    %v58 = vld [vmem:[#allocation5 + $0x24] sm:$0xf]
    %v59 = vld [vmem:[#allocation5 + $0x28] sm:$0xf]
    %v60 = vld [vmem:[#allocation5 + $0x2c] sm:$0xf]
    %v61 = vld [vmem:[#allocation5 + $0x30] sm:$0xf]
    %v62 = vld [vmem:[#allocation5 + $0x34] sm:$0xf]
    %v63 = vld [vmem:[#allocation5 + $0x38] sm:$0xf]
    %v64 = vld [vmem:[#allocation5 + $0x3c] sm:$0xf]
    %v65 = vld [vmem:[#allocation5 + $0x40] sm:$0xf]
    %v66 = vld [vmem:[#allocation5 + $0x44] sm:$0xf]
    %v67 = vld [vmem:[#allocation5 + $0x48] sm:$0xf]
    %v68 = vld [vmem:[#allocation5 + $0x4c] sm:$0xf]
    %v69 = vld [vmem:[#allocation5 + $0x50] sm:$0xf]
    %v70 = vld [vmem:[#allocation5 + $0x54] sm:$0xf]
    %v71 = vld [vmem:[#allocation5 + $0x58] sm:$0xf]
    %v72 = vld [vmem:[#allocation5 + $0x5c] sm:$0xf]
    %v73 = vld [vmem:[#allocation5 + $0x60] sm:$0xf]
    %v74 = vld [vmem:[#allocation5 + $0x64] sm:$0xf]
    %v75 = vld [vmem:[#allocation5 + $0x68] sm:$0xf]
    %v76 = vld [vmem:[#allocation5 + $0x6c] sm:$0xf]
    %v77 = vld [vmem:[#allocation5 + $0x70] sm:$0xf]
    %v78 = vld [vmem:[#allocation5 + $0x74] sm:$0xf]
    %v79 = vld [vmem:[#allocation5 + $0x78] sm:$0xf]
    %v80 = vld [vmem:[#allocation5 + $0x7c] sm:$0xf]
    %v81 = vld [vmem:[%s2] sm:$0x1]
    %v83 = vperm.slane %v81, 0
    %v87 = vunpack.c.l.b16 %v47
    %v88 = vunpack.c.h.b16 %v47
    %v89 = vunpack.c.l.b16 %v48
    %v90 = vunpack.c.h.b16 %v48
    %v91 = vpack.c.b16 %v89, %v87
    %v92 = vpack.c.b16 %v90, %v88
    %v127 = vunpack.c.l.b16 %v49
    %v128 = vunpack.c.l.b16 %v50
    %v129 = vunpack.c.l.b16 %v51
    %v130 = vunpack.c.l.b16 %v52
    %v131 = vunpack.c.l.b16 %v53
    %v132 = vunpack.c.l.b16 %v54
    %v133 = vunpack.c.l.b16 %v55
    %v134 = vunpack.c.l.b16 %v56
    %v135 = vunpack.c.l.b16 %v57
    %v136 = vunpack.c.l.b16 %v58
    %v137 = vunpack.c.l.b16 %v59
    %v138 = vunpack.c.l.b16 %v60
    %v139 = vunpack.c.l.b16 %v61
    %v140 = vunpack.c.l.b16 %v62
    %v141 = vunpack.c.l.b16 %v63
    %v142 = vunpack.c.l.b16 %v64
    %v143 = vunpack.c.l.b16 %v65
    %v144 = vunpack.c.l.b16 %v66
    %v145 = vunpack.c.l.b16 %v67
    %v146 = vunpack.c.l.b16 %v68
    %v147 = vunpack.c.l.b16 %v69
    %v148 = vunpack.c.l.b16 %v70
    %v149 = vunpack.c.l.b16 %v71
    %v150 = vunpack.c.l.b16 %v72
    %v151 = vunpack.c.l.b16 %v73
    %v152 = vunpack.c.l.b16 %v74
    %v153 = vunpack.c.l.b16 %v75
    %v154 = vunpack.c.l.b16 %v76
    %v155 = vunpack.c.l.b16 %v77
    %v156 = vunpack.c.l.b16 %v78
    %v157 = vunpack.c.l.b16 %v79
    %v158 = vunpack.c.l.b16 %v80
    %v159 = vpack.c.b16 %v128, %v127
    %v160 = vpack.c.b16 %v130, %v129
    %v161 = vpack.c.b16 %v132, %v131
    %v162 = vpack.c.b16 %v134, %v133
    %v163 = vpack.c.b16 %v136, %v135
    %v164 = vpack.c.b16 %v138, %v137
    %v165 = vpack.c.b16 %v140, %v139
    %v166 = vpack.c.b16 %v142, %v141
    %v167 = vpack.c.b16 %v144, %v143
    %v168 = vpack.c.b16 %v146, %v145
    %v169 = vpack.c.b16 %v148, %v147
    %v170 = vpack.c.b16 %v150, %v149
    %v171 = vpack.c.b16 %v152, %v151
    %v172 = vpack.c.b16 %v154, %v153
    %v173 = vpack.c.b16 %v156, %v155
    %v174 = vpack.c.b16 %v158, %v157
    %191 = vmatpush.bf16.msra.mxu0 %v166
    %192 = vmatpush.bf16.msra.mxu0 %v165
    %193 = vmatpush.bf16.msra.mxu0 %v164
    %194 = vmatpush.bf16.msra.mxu0 %v163
    %195 = vmatpush.bf16.msra.mxu0 %v162
    %196 = vmatpush.bf16.msra.mxu0 %v161
    %197 = vmatpush.bf16.msra.mxu0 %v160
    %198 = vmatpush.bf16.msra.mxu0 %v159
    %199 = vmatmul.bf16.gmra.mxu0 %v91
    %v200 = vpop.f32.mrf.mxu0
    %v201 = vadd.f32 %v83, %v200
    %v202 = vpop.f32.mrf.mxu0
    %v203 = vadd.f32 %v83, %v202
    %204 = vdwg.mxu0
    %205 = vmatpush.bf16.msra.mxu0 %v174
    %206 = vmatpush.bf16.msra.mxu0 %v173
    %207 = vmatpush.bf16.msra.mxu0 %v172
    %208 = vmatpush.bf16.msra.mxu0 %v171
    %209 = vmatpush.bf16.msra.mxu0 %v170
    %210 = vmatpush.bf16.msra.mxu0 %v169
    %211 = vmatpush.bf16.msra.mxu0 %v168
    %212 = vmatpush.bf16.msra.mxu0 %v167
    %213 = vmatmul.bf16.gmra.mxu0 %v92
    %v214 = vpop.f32.mrf.mxu0
    %v215 = vadd.f32 %v201, %v214
    %v216 = vpop.f32.mrf.mxu0
    %v217 = vadd.f32 %v203, %v216
    %218 = vdwg.mxu0
    %v219 = vmax.f32 %v215, 0.0
    %v220 = vmax.f32 %v217, 0.0
    %221 = vst [vmem:[#allocation7] sm:$0xff] %v219
    %222 = vst [vmem:[#allocation7 + $0x8] sm:$0xff] %v220
    // Predicated region
    $region22: #{tpu_custom_call.1} parent=1 // pred_check
      _
    $region23: #{tpu_custom_call.1} parent=1 // pred_check_branch
      %224 = sbr.rel (0) target = $region25
    $region24: #{tpu_custom_call.1} parent=1 // pred_region
      %226 = vsyncadd [#allocation4], 0
      %s227 = sshll.u32 [#allocation7], 4
      %s228 = int_to_ptr.vmem [resolvable:$true] %s227
      %s229 = sshll.u32 %s3, 4
      %s230 = int_to_ptr.hbm [resolvable:$true] %s229
      %235 = dma.vmem_to_hbm [thread:$0]  %s228, 256, %s230, [#allocation4], 128, 128, 8
    $region25: #{tpu_custom_call.1} parent=1 // pred_fallthru
      _
    // Predicated region
    $region26: #{tpu_custom_call.1} parent=1 // pred_check
      _
    $region27: #{tpu_custom_call.1} parent=1 // pred_check_branch
      %237 = sbr.rel (0) target = $region29
    $region28: #{tpu_custom_call.1} parent=1 // pred_region
      %239 = dma.done [#allocation4], 256
    $region29: #{tpu_custom_call.1} parent=1 // pred_fallthru
      _
    %240 = vsyncpa [#allocation3], 1
    %241 = vsyncpa [#allocation6], 1
    %242 = vsyncpa [#allocation4], 1

</llo_original>
